<compile_context>
chip_gen: v7x
topology: tpu7x:2x2x1
jax: 0.10.0
libtpu: 0.0.40
codegen_flags: <defaults>
</compile_context>

<pallas_src>
import functools

import numpy as np
import jax
import jax.numpy as jnp
from jax.experimental import pallas as pl
from jax.experimental.pallas import tpu as pltpu


def _fused_forward_kernel(x_ref, wconv_ref, wlin_ref, blin_ref, out_ref, *, F):
    """One grid step == `bb` batch elements packed along the lane axis.

    x_ref     : (1, 4*W+1, bb) bf16  raw input, row i*W + t; last row = ones
                                     (conv-bias row); lane = batch element.
    wconv_ref : (4*F, 4*W+1)   bf16  banded conv1|conv3 weight + bias column;
                                     row = w*F + c*Wp + p (w = within-pool offset).
    wlin_ref  : (3, F)         bf16  Linear weight (natural flatten order c*Wp+p).
    blin_ref  : (3, 1)         f32   Linear bias.
    out_ref   : (1, 3, bb)     f32   result, batch on the lane axis.
    """
    # conv1 + conv3 + channel concat + (replicate / zero) pads + conv bias for
    # every width position: ONE MXU matmul, f32 accumulation.
    conv = jnp.dot(wconv_ref[...], x_ref[0],
                   preferred_element_type=jnp.float32)            # (4F, bb) f32

    # MaxPool2d((1, 4)): max over the 4 within-window offsets == 3 VPU maxima
    # over sublane-aligned F-row chunks.  Rows already in flatten order.
    pooled = jnp.maximum(jnp.maximum(conv[0:F, :], conv[F:2 * F, :]),
                         jnp.maximum(conv[2 * F:3 * F, :], conv[3 * F:4 * F, :]))

    act = jnp.maximum(pooled, 0.0).astype(jnp.bfloat16)           # ReLU, (F, bb)

    # Linear: one MXU matmul + broadcast f32 bias add; lane-dense (3, bb) store.
    out_ref[0] = (jnp.dot(wlin_ref[...], act, preferred_element_type=jnp.float32)
                  + blin_ref[...])


def _build_banded_conv_weight(params, W, Wp):
    """(128*Wp, 4*W+1) weight folding conv1+conv3, concat, pads and bias.

    Row r = w*(32*Wp) + c*Wp + p corresponds to conv-output channel c at width
    position x = 4*p + w of the (replicate-padded) concatenated conv output.
    Column i*W + t reads raw-input element (i, t); column 4*W is the ones/bias
    column.
    """
    # Per-patch weights in (j*4 + i) tap order: the 4x4 patch for output
    # position x covers input columns max(x-1,0)-1 .. max(x-1,0)+2 (conv3's
    # width zero-pad); conv1's width-2 kernel sits at taps j = 1..2.
    w1f = jnp.transpose(params["conv1_w"][:, 0], (0, 2, 1)).reshape(12, 8)
    w3f = jnp.transpose(params["conv3_w"][:, 0], (0, 2, 1)).reshape(20, 16)
    w_comb = jnp.concatenate(
        [jnp.concatenate([jnp.zeros((12, 4), jnp.float32), w1f,
                          jnp.zeros((12, 4), jnp.float32)], axis=1),
         w3f], axis=0)                                              # (32, 16)
    b_comb = jnp.concatenate([params["conv1_b"], params["conv3_b"]])  # (32,)

    # Constant 0/1 selection tensor (shape-only, no parameters):
    # patch(x)[j*4 + i] = input[i, max(x-1,0) + j - 1], 0 outside [0, W).
    sel = np.zeros((4 * Wp, 16, 4 * W), np.float32)
    for x in range(4 * Wp):
        xs = max(x - 1, 0)            # replicate-pad of the conv outputs
        for j in range(4):
            t = xs + j - 1            # conv3's width zero-pad
            if 0 <= t < W:
                for i in range(4):
                    sel[x, j * 4 + i, i * W + t] = 1.0
    sel = jnp.asarray(sel)

    band = jnp.einsum("ck,xkm->xcm", w_comb, sel)                   # (4Wp, 32, 4W)
    band = (band.reshape(Wp, 4, 32, 4 * W)                          # (p, w, c, m)
                .transpose(1, 2, 0, 3)                              # (w, c, p, m)
                .reshape(128 * Wp, 4 * W))
    bias = jnp.broadcast_to(b_comb[None, :, None], (4, 32, Wp)).reshape(128 * Wp, 1)
    return jnp.concatenate([band, bias], axis=1)                    # (128*Wp, 4W+1)


def multi_conv2d_net_forward(dna_data, Na_data, params, *, batch_block=2048):
    del Na_data  # unused by the reference forward
    B, H, W = dna_data.shape
    assert H == 4, "conv kernels have height 4 with no height padding"
    assert W >= 4
    Wp = W // 4              # pooled width (floor mode)
    F = 32 * Wp              # flatten size
    K = 4 * W + 1            # raw-input rows + ones (conv-bias) row

    # Batch blocking: bb is a lane-dense multiple of 128.
    bb = min(max(128, (batch_block + 127) // 128 * 128), (B + 127) // 128 * 128)
    nb = (B + bb - 1) // bb
    Bp = nb * bb

    # ---- input slab: (nb, K, bb), batch on lanes, bf16 -----------------------
    x = dna_data.astype(jnp.bfloat16)
    if Bp != B:
        x = jnp.pad(x, ((0, Bp - B), (0, 0), (0, 0)))
    xs = x.reshape(nb, bb, 4, W).transpose(0, 2, 3, 1).reshape(nb, 4 * W, bb)
    xs = jnp.concatenate([xs, jnp.ones((nb, 1, bb), jnp.bfloat16)], axis=1)

    # ---- parameters (resident in VMEM across the whole grid) -----------------
    w_conv = _build_banded_conv_weight(params, W, Wp).astype(jnp.bfloat16)  # (4F, K)
    w_lin = params["lin_w"].astype(jnp.bfloat16)                            # (3, F)
    b_lin = params["lin_b"].reshape(3, 1).astype(jnp.float32)               # (3, 1)

    # ---- VMEM budget per grid step (so large batch_block compiles cleanly) ---
    vmem_bytes = (2 * K * bb * 2          # bf16 input block, double-buffered
                  + 4 * F * bb * 4        # f32 conv intermediate
                  + F * bb * (4 + 2)      # pooled f32 + act bf16
                  + 2 * 4 * F * K * 2     # resident banded weight buffers
                  + 2 * 3 * bb * 4        # output block, double-buffered
                  + (1 << 20))            # slack
    vmem_limit = int(min(48 * 1024 * 1024, max(32 * 1024 * 1024, vmem_bytes)))

    kernel = functools.partial(_fused_forward_kernel, F=F)
    out = pl.pallas_call(
        kernel,
        out_shape=jax.ShapeDtypeStruct((nb, 3, bb), jnp.float32),
        grid=(nb,),
        in_specs=[
            pl.BlockSpec((1, K, bb), lambda n: (n, 0, 0)),     # streamed input
            pl.BlockSpec((4 * F, K), lambda n: (0, 0)),        # resident weights
            pl.BlockSpec((3, F), lambda n: (0, 0)),
            pl.BlockSpec((3, 1), lambda n: (0, 0)),
        ],
        out_specs=pl.BlockSpec((1, 3, bb), lambda n: (n, 0, 0)),
        compiler_params=pltpu.CompilerParams(
            dimension_semantics=("parallel",),
            vmem_limit_bytes=vmem_limit),
    )(xs, w_conv, w_lin, b_lin)

    # (nb, 3, bb) -> (B, 3)
    return jnp.transpose(out, (0, 2, 1)).reshape(Bp, 3)[:B]


def init_params(key, W):
    Wp = W // 4
    lin_in = 32 * Wp  # actual flatten size (module's declared 182 is inconsistent)
    ks = jax.random.split(key, 10)

    def u(k, shape, fan_in):
        bound = 1.0 / np.sqrt(fan_in)
        return jax.random.uniform(k, shape, jnp.float32, -bound, bound)

    return dict(
        # conv0 / conv2: present in __init__, dead in forward
        conv0_w=u(ks[0], (4, 1, 4, 1), 4), conv0_b=u(ks[1], (4,), 4),
        conv1_w=u(ks[2], (12, 1, 4, 2), 8), conv1_b=u(ks[3], (12,), 8),
        conv2_w=u(ks[4], (2, 1, 4, 3), 12), conv2_b=u(ks[5], (2,), 12),
        conv3_w=u(ks[6], (20, 1, 4, 4), 16), conv3_b=u(ks[7], (20,), 16),
        lin_w=u(ks[8], (3, lin_in), lin_in), lin_b=u(ks[9], (3,), lin_in),
    )


def ref_forward_np(dna, params):
    """Pure numpy (float64) reference of the PyTorch forward."""
    dna = np.asarray(dna, np.float64)
    w1 = np.asarray(params["conv1_w"], np.float64); b1 = np.asarray(params["conv1_b"], np.float64)
    w3 = np.asarray(params["conv3_w"], np.float64); b3 = np.asarray(params["conv3_b"], np.float64)
    wl = np.asarray(params["lin_w"], np.float64); bl = np.asarray(params["lin_b"], np.float64)
    B, H, W = dna.shape

    def conv(x, w, b, padw):
        xpd = np.pad(x, ((0, 0), (0, 0), (padw, padw)))
        O, _, kh, kw = w.shape
        Wout = xpd.shape[2] - kw + 1
        out = np.zeros((B, O, Wout))
        for o in range(O):
            for xpos in range(Wout):
                out[:, o, xpos] = np.sum(w[o, 0][None] * xpd[:, :, xpos:xpos + kw],
                                         axis=(1, 2)) + b[o]
        return out

    c1 = conv(dna, w1, b1, 0)
    c3 = conv(dna, w3, b3, 1)
    c1 = np.concatenate([c1[:, :, :1], c1], axis=2)     # replicate pad (1, 0)
    c3 = np.concatenate([c3[:, :, :1], c3], axis=2)     # replicate pad (1, 0)
    full = np.concatenate([c1, c3], axis=1)             # (B, 32, W)
    Wp = W // 4
    pooled = full[:, :, :Wp * 4].reshape(B, 32, Wp, 4).max(axis=3)
    flat = np.maximum(pooled.reshape(B, 32 * Wp), 0.0)
    return flat @ wl.T + bl


if __name__ == "__main__":
    key = jax.random.PRNGKey(0)
    k_dna, k_na, k_par = jax.random.split(key, 3)

    B, H, W = 2, 4, 24
    dna_data = jax.random.normal(k_dna, (B, H, W), jnp.float32)
    Na_data = jax.random.normal(k_na, (B, 8), jnp.float32)   # unused by forward
    params = init_params(k_par, W)

    out = multi_conv2d_net_forward(dna_data, Na_data, params)
    out = jax.block_until_ready(out)

    ref = ref_forward_np(np.asarray(dna_data), {k: np.asarray(v) for k, v in params.items()})
    np.testing.assert_allclose(np.asarray(out), ref, rtol=1e-2, atol=1e-2)
    print("KERNEL_OK")
</pallas_src>

<mosaic_0001>
module attributes {stable_mosaic.version = 11 : i64} {
  func.func @_fused_forward_kernel(%arg0: i32, %arg1: memref<1x97x128xbf16, #tpu.memory_space<vmem>>, %arg2: memref<768x97xbf16, #tpu.memory_space<vmem>>, %arg3: memref<3x192xbf16, #tpu.memory_space<vmem>>, %arg4: memref<3x1xf32, #tpu.memory_space<vmem>>, %arg5: memref<1x3x128xf32, #tpu.memory_space<vmem>>) attributes {dimension_semantics = [#tpu.dimension_semantics<parallel>], iteration_bounds = array<i64: 1>, scalar_prefetch = 0 : i64, scratch_operands = 0 : i64, tpu.core_type = #tpu.core_type<tc>, window_params = [{transform_indices = @transform_0, window_bounds = array<i64: 1, 97, 128>}, {pipeline_mode = #tpu.pipeline_mode<synchronous>, transform_indices = @transform_1, window_bounds = array<i64: 768, 97>}, {pipeline_mode = #tpu.pipeline_mode<synchronous>, transform_indices = @transform_2, window_bounds = array<i64: 3, 192>}, {pipeline_mode = #tpu.pipeline_mode<synchronous>, transform_indices = @transform_3, window_bounds = array<i64: 3, 1>}, {transform_indices = @transform_4, window_bounds = array<i64: 1, 3, 128>}]} {
    %c0 = arith.constant 0 : index
    %c0_0 = arith.constant 0 : index
    %0 = vector.load %arg2[%c0, %c0_0] : memref<768x97xbf16, #tpu.memory_space<vmem>>, vector<768x97xbf16>
    %c0_1 = arith.constant 0 : index
    %c0_2 = arith.constant 0 : index
    %c0_3 = arith.constant 0 : index
    %1 = vector.load %arg1[%c0_1, %c0_2, %c0_3] : memref<1x97x128xbf16, #tpu.memory_space<vmem>>, vector<1x97x128xbf16>
    %2 = vector.shape_cast %1 : vector<1x97x128xbf16> to vector<97x128xbf16>
    %cst = arith.constant dense<0.000000e+00> : vector<768x128xf32>
    %3 = tpu.matmul %0, %2, %cst {dimension_numbers = #tpu.dot_dimension_numbers<[1], [0], [0], [1], [0, 0, 1, 1], [], []>} : vector<768x97xbf16>, vector<97x128xbf16>, vector<768x128xf32> -> vector<768x128xf32>
    %4 = vector.extract_strided_slice %3 {offsets = [0, 0], sizes = [192, 128], strides = [1, 1]} : vector<768x128xf32> to vector<192x128xf32>
    %5 = vector.extract_strided_slice %3 {offsets = [192, 0], sizes = [192, 128], strides = [1, 1]} : vector<768x128xf32> to vector<192x128xf32>
    %6 = arith.maximumf %4, %5 : vector<192x128xf32>
    %7 = vector.extract_strided_slice %3 {offsets = [384, 0], sizes = [192, 128], strides = [1, 1]} : vector<768x128xf32> to vector<192x128xf32>
    %8 = vector.extract_strided_slice %3 {offsets = [576, 0], sizes = [192, 128], strides = [1, 1]} : vector<768x128xf32> to vector<192x128xf32>
    %9 = arith.maximumf %7, %8 : vector<192x128xf32>
    %10 = arith.maximumf %6, %9 : vector<192x128xf32>
    %cst_4 = arith.constant 0.000000e+00 : f32
    %11 = vector.broadcast %cst_4 : f32 to vector<192x128xf32>
    %12 = arith.maximumf %10, %11 : vector<192x128xf32>
    %13 = arith.truncf %12 : vector<192x128xf32> to vector<192x128xbf16>
    %c0_5 = arith.constant 0 : index
    %c0_6 = arith.constant 0 : index
    %14 = vector.load %arg3[%c0_5, %c0_6] : memref<3x192xbf16, #tpu.memory_space<vmem>>, vector<3x192xbf16>
    %cst_7 = arith.constant dense<0.000000e+00> : vector<3x128xf32>
    %15 = tpu.matmul %14, %13, %cst_7 {dimension_numbers = #tpu.dot_dimension_numbers<[1], [0], [0], [1], [0, 0, 1, 1], [], []>} : vector<3x192xbf16>, vector<192x128xbf16>, vector<3x128xf32> -> vector<3x128xf32>
    %c0_8 = arith.constant 0 : index
    %c0_9 = arith.constant 0 : index
    %16 = vector.load %arg4[%c0_8, %c0_9] : memref<3x1xf32, #tpu.memory_space<vmem>>, vector<3x1xf32>
    %17 = vector.broadcast %16 : vector<3x1xf32> to vector<3x128xf32>
    %18 = arith.addf %15, %17 : vector<3x128xf32>
    %c0_10 = arith.constant 0 : index
    %c0_11 = arith.constant 0 : index
    %c0_12 = arith.constant 0 : index
    %19 = vector.load %arg5[%c0_10, %c0_11, %c0_12] : memref<1x3x128xf32, #tpu.memory_space<vmem>>, vector<1x3x128xf32>
    %20 = vector.shape_cast %19 : vector<1x3x128xf32> to vector<3x128xf32>
    %21 = vector.shape_cast %18 : vector<3x128xf32> to vector<1x3x128xf32>
    tpu.vector_store %arg5[%c0_10, %c0_11, %c0_12], %21 {strides = array<i32>} : memref<1x3x128xf32, #tpu.memory_space<vmem>>, vector<1x3x128xf32>,
    return
  }
  func.func @transform_0(%arg0: i32) -> (i32, i32, i32) {
    %c0_i32 = arith.constant 0 : i32
    %c0_i32_0 = arith.constant 0 : i32
    %c0_i32_1 = arith.constant 0 : i32
    return %arg0, %c0_i32, %c0_i32_0 : i32, i32, i32
  }
  func.func @transform_1(%arg0: i32) -> (i32, i32) {
    %c0_i32 = arith.constant 0 : i32
    %c0_i32_0 = arith.constant 0 : i32
    %c0_i32_1 = arith.constant 0 : i32
    return %c0_i32, %c0_i32_0 : i32, i32
  }
  func.func @transform_2(%arg0: i32) -> (i32, i32) {
    %c0_i32 = arith.constant 0 : i32
    %c0_i32_0 = arith.constant 0 : i32
    %c0_i32_1 = arith.constant 0 : i32
    return %c0_i32, %c0_i32_0 : i32, i32
  }
  func.func @transform_3(%arg0: i32) -> (i32, i32) {
    %c0_i32 = arith.constant 0 : i32
    %c0_i32_0 = arith.constant 0 : i32
    %c0_i32_1 = arith.constant 0 : i32
    return %c0_i32, %c0_i32_0 : i32, i32
  }
  func.func @transform_4(%arg0: i32) -> (i32, i32, i32) {
    %c0_i32 = arith.constant 0 : i32
    %c0_i32_0 = arith.constant 0 : i32
    %c0_i32_1 = arith.constant 0 : i32
    return %arg0, %c0_i32, %c0_i32_0 : i32, i32, i32
  }
}

</mosaic_0001>

<llo_original>
// kernel: tpu_custom_call.1
$region0: #{tpu_custom_call.1}
  #allocation0 [shape = 'u32[]', space=smem, size = 0x4, offset = 0x4, fixed_abs, tag = 'smem constant byte address 0x4 - core index']
  #allocation1 [shape = 'u32[144,128]{1,0:T(1,128)}', space=vmem, size = 0x12000, scoped, tag = 'internal scratch']
  %s0 = inlined_call_operand.vmem [shape: bf16[1,97,128], index: 0, kind: input, shape index: {}]
  %s1 = inlined_call_operand.vmem [shape: bf16[768,97], index: 1, kind: input, shape index: {}]
  %s2 = inlined_call_operand.vmem [shape: bf16[3,192], index: 2, kind: input, shape index: {}]
  %s3 = inlined_call_operand.vmem [shape: f32[3,1], index: 3, kind: input, shape index: {}]
  %s4 = inlined_call_operand.vmem [shape: f32[1,3,128], index: 4, kind: output, shape index: {}]
  %s5 = sld [smem:[#allocation0]]
  $region26: #{tpu_custom_call.1} parent=0
    _
  %s7 = ssub.s32 1, %s5
  %s8 = scalar_select 0, %s7, %s5
  // Predicated region
  $region2: #{tpu_custom_call.1} parent=0 // pred_check
    _
  $region3: #{tpu_custom_call.1} parent=0 // pred_check_branch
    %10 = sbr.rel (0) target = $region5
  $region4: #{tpu_custom_call.1} parent=0 // pred_region
    _
  $region5: #{tpu_custom_call.1} parent=0 // pred_fallthru
    _
  // Predicated region
  $region6: #{tpu_custom_call.1} parent=0 // pred_check
    _
  $region7: #{tpu_custom_call.1} parent=0 // pred_check_branch
    %12 = sbr.rel (0) target = $region9
  $region8: #{tpu_custom_call.1} parent=0 // pred_region
    _
  $region9: #{tpu_custom_call.1} parent=0 // pred_fallthru
    _
  // Predicated region
  $region10: #{tpu_custom_call.1} parent=0 // pred_check
    _
  $region11: #{tpu_custom_call.1} parent=0 // pred_check_branch
    %14 = sbr.rel (0) target = $region13
  $region12: #{tpu_custom_call.1} parent=0 // pred_region
    _
  $region13: #{tpu_custom_call.1} parent=0 // pred_fallthru
    _
  // Predicated region
  $region14: #{tpu_custom_call.1} parent=0 // pred_check
    _
  $region15: #{tpu_custom_call.1} parent=0 // pred_check_branch
    %16 = sbr.rel (0) target = $region17
  $region16: #{tpu_custom_call.1} parent=0 // pred_region
    _
  $region17: #{tpu_custom_call.1} parent=0 // pred_fallthru
    _
  %v18 = vld [vmem:[%s1] sm:$0xf]
  %v19 = vld [vmem:[%s1 + $0x4] sm:$0xf]
  %v20 = vld [vmem:[%s1 + $0x8] sm:$0xf]
  %v21 = vld [vmem:[%s1 + $0xc] sm:$0xf]
  %v22 = vld [vmem:[%s1 + $0x10] sm:$0xf]
  %v23 = vld [vmem:[%s1 + $0x14] sm:$0xf]
  %v24 = vld [vmem:[%s1 + $0x18] sm:$0xf]
  %v25 = vld [vmem:[%s1 + $0x1c] sm:$0xf]
  %v26 = vld [vmem:[%s1 + $0x20] sm:$0xf]
  %v27 = vld [vmem:[%s1 + $0x24] sm:$0xf]
  %v28 = vld [vmem:[%s1 + $0x28] sm:$0xf]
  %v29 = vld [vmem:[%s1 + $0x2c] sm:$0xf]
  %v30 = vld [vmem:[%s1 + $0x30] sm:$0xf]
  %v31 = vld [vmem:[%s1 + $0x34] sm:$0xf]
  %v32 = vld [vmem:[%s1 + $0x38] sm:$0xf]
  %v33 = vld [vmem:[%s1 + $0x3c] sm:$0xf]
  %v34 = vld [vmem:[%s1 + $0x40] sm:$0xf]
  %v35 = vld [vmem:[%s1 + $0x44] sm:$0xf]
  %v36 = vld [vmem:[%s1 + $0x48] sm:$0xf]
  %v37 = vld [vmem:[%s1 + $0x4c] sm:$0xf]
  %v38 = vld [vmem:[%s1 + $0x50] sm:$0xf]
  %v39 = vld [vmem:[%s1 + $0x54] sm:$0xf]
  %v40 = vld [vmem:[%s1 + $0x58] sm:$0xf]
  %v41 = vld [vmem:[%s1 + $0x5c] sm:$0xf]
  %v42 = vld [vmem:[%s1 + $0x60] sm:$0xf]
  %v43 = vld [vmem:[%s1 + $0x64] sm:$0xf]
  %v44 = vld [vmem:[%s1 + $0x68] sm:$0xf]
  %v45 = vld [vmem:[%s1 + $0x6c] sm:$0xf]
  %v46 = vld [vmem:[%s1 + $0x70] sm:$0xf]
  %v47 = vld [vmem:[%s1 + $0x74] sm:$0xf]
  %v48 = vld [vmem:[%s1 + $0x78] sm:$0xf]
  %v49 = vld [vmem:[%s1 + $0x7c] sm:$0xf]
  %v50 = vld [vmem:[%s1 + $0x80] sm:$0xf]
  %v51 = vld [vmem:[%s1 + $0x84] sm:$0xf]
  %v52 = vld [vmem:[%s1 + $0x88] sm:$0xf]
  %v53 = vld [vmem:[%s1 + $0x8c] sm:$0xf]
  %v54 = vld [vmem:[%s1 + $0x90] sm:$0xf]
  %v55 = vld [vmem:[%s1 + $0x94] sm:$0xf]
  %v56 = vld [vmem:[%s1 + $0x98] sm:$0xf]
  %v57 = vld [vmem:[%s1 + $0x9c] sm:$0xf]
  %v58 = vld [vmem:[%s1 + $0xa0] sm:$0xf]
  %v59 = vld [vmem:[%s1 + $0xa4] sm:$0xf]
  %v60 = vld [vmem:[%s1 + $0xa8] sm:$0xf]
  %v61 = vld [vmem:[%s1 + $0xac] sm:$0xf]
  %v62 = vld [vmem:[%s1 + $0xb0] sm:$0xf]
  %v63 = vld [vmem:[%s1 + $0xb4] sm:$0xf]
  %v64 = vld [vmem:[%s1 + $0xb8] sm:$0xf]
  %v65 = vld [vmem:[%s1 + $0xbc] sm:$0xf]
  %v66 = vld [vmem:[%s1 + $0xc0] sm:$0xf]
  %v67 = vld [vmem:[%s1 + $0xc4] sm:$0xf]
  %v68 = vld [vmem:[%s1 + $0xc8] sm:$0xf]
  %v69 = vld [vmem:[%s1 + $0xcc] sm:$0xf]
  %v70 = vld [vmem:[%s1 + $0xd0] sm:$0xf]
  %v71 = vld [vmem:[%s1 + $0xd4] sm:$0xf]
  %v72 = vld [vmem:[%s1 + $0xd8] sm:$0xf]
  %v73 = vld [vmem:[%s1 + $0xdc] sm:$0xf]
  %v74 = vld [vmem:[%s1 + $0xe0] sm:$0xf]
  %v75 = vld [vmem:[%s1 + $0xe4] sm:$0xf]
  %v76 = vld [vmem:[%s1 + $0xe8] sm:$0xf]
  %v77 = vld [vmem:[%s1 + $0xec] sm:$0xf]
  %v78 = vld [vmem:[%s1 + $0xf0] sm:$0xf]
  %v79 = vld [vmem:[%s1 + $0xf4] sm:$0xf]
  %v80 = vld [vmem:[%s1 + $0xf8] sm:$0xf]
  %v81 = vld [vmem:[%s1 + $0xfc] sm:$0xf]
  %v82 = vld [vmem:[%s1 + $0x100] sm:$0xf]
  %v83 = vld [vmem:[%s1 + $0x104] sm:$0xf]
  %v84 = vld [vmem:[%s1 + $0x108] sm:$0xf]
  %v85 = vld [vmem:[%s1 + $0x10c] sm:$0xf]
  %v86 = vld [vmem:[%s1 + $0x110] sm:$0xf]
  %v87 = vld [vmem:[%s1 + $0x114] sm:$0xf]
  %v88 = vld [vmem:[%s1 + $0x118] sm:$0xf]
  %v89 = vld [vmem:[%s1 + $0x11c] sm:$0xf]
  %v90 = vld [vmem:[%s1 + $0x120] sm:$0xf]
  %v91 = vld [vmem:[%s1 + $0x124] sm:$0xf]
  %v92 = vld [vmem:[%s1 + $0x128] sm:$0xf]
  %v93 = vld [vmem:[%s1 + $0x12c] sm:$0xf]
  %v94 = vld [vmem:[%s1 + $0x130] sm:$0xf]
  %v95 = vld [vmem:[%s1 + $0x134] sm:$0xf]
  %v96 = vld [vmem:[%s1 + $0x138] sm:$0xf]
  %v97 = vld [vmem:[%s1 + $0x13c] sm:$0xf]
  %v98 = vld [vmem:[%s1 + $0x140] sm:$0xf]
  %v99 = vld [vmem:[%s1 + $0x144] sm:$0xf]
  %v100 = vld [vmem:[%s1 + $0x148] sm:$0xf]
  %v101 = vld [vmem:[%s1 + $0x14c] sm:$0xf]
  %v102 = vld [vmem:[%s1 + $0x150] sm:$0xf]
  %v103 = vld [vmem:[%s1 + $0x154] sm:$0xf]
  %v104 = vld [vmem:[%s1 + $0x158] sm:$0xf]
  %v105 = vld [vmem:[%s1 + $0x15c] sm:$0xf]
  %v106 = vld [vmem:[%s1 + $0x160] sm:$0xf]
  %v107 = vld [vmem:[%s1 + $0x164] sm:$0xf]
  %v108 = vld [vmem:[%s1 + $0x168] sm:$0xf]
  %v109 = vld [vmem:[%s1 + $0x16c] sm:$0xf]
  %v110 = vld [vmem:[%s1 + $0x170] sm:$0xf]
  %v111 = vld [vmem:[%s1 + $0x174] sm:$0xf]
  %v112 = vld [vmem:[%s1 + $0x178] sm:$0xf]
  %v113 = vld [vmem:[%s1 + $0x17c] sm:$0xf]
  %v114 = vld [vmem:[%s0] sm:$0xf]
  %v115 = vld [vmem:[%s0 + $0x4] sm:$0xf]
  %v116 = vld [vmem:[%s0 + $0x8] sm:$0xf]
  %v117 = vld [vmem:[%s0 + $0xc] sm:$0xf]
  %v118 = vld [vmem:[%s0 + $0x10] sm:$0xf]
  %v119 = vld [vmem:[%s0 + $0x14] sm:$0xf]
  %v120 = vld [vmem:[%s0 + $0x18] sm:$0xf]
  %v121 = vld [vmem:[%s0 + $0x1c] sm:$0xf]
  %v122 = vld [vmem:[%s0 + $0x20] sm:$0xf]
  %v123 = vld [vmem:[%s0 + $0x24] sm:$0xf]
  %v124 = vld [vmem:[%s0 + $0x28] sm:$0xf]
  %v125 = vld [vmem:[%s0 + $0x2c] sm:$0xf]
  %v126 = vld [vmem:[%s0 + $0x30] sm:$0x1]
  %v223 = vunpack.c.l.b16 %v18
  %v224 = vunpack.c.l.b16 %v19
  %v225 = vunpack.c.l.b16 %v20
  %v226 = vunpack.c.l.b16 %v21
  %v227 = vunpack.c.l.b16 %v22
  %v228 = vunpack.c.l.b16 %v23
  %v229 = vunpack.c.l.b16 %v24
  %v230 = vunpack.c.l.b16 %v25
  %v231 = vunpack.c.l.b16 %v26
  %v232 = vunpack.c.l.b16 %v27
  %v233 = vunpack.c.l.b16 %v28
  %v234 = vunpack.c.l.b16 %v29
  %v235 = vunpack.c.l.b16 %v30
  %v236 = vunpack.c.l.b16 %v31
  %v237 = vunpack.c.l.b16 %v32
  %v238 = vunpack.c.l.b16 %v33
  %v239 = vunpack.c.l.b16 %v34
  %v240 = vunpack.c.l.b16 %v35
  %v241 = vunpack.c.l.b16 %v36
  %v242 = vunpack.c.l.b16 %v37
  %v243 = vunpack.c.l.b16 %v38
  %v244 = vunpack.c.l.b16 %v39
  %v245 = vunpack.c.l.b16 %v40
  %v246 = vunpack.c.l.b16 %v41
  %v247 = vunpack.c.l.b16 %v42
  %v248 = vunpack.c.l.b16 %v43
  %v249 = vunpack.c.l.b16 %v44
  %v250 = vunpack.c.l.b16 %v45
  %v251 = vunpack.c.l.b16 %v46
  %v252 = vunpack.c.l.b16 %v47
  %v253 = vunpack.c.l.b16 %v48
  %v254 = vunpack.c.l.b16 %v49
  %v255 = vunpack.c.l.b16 %v50
  %v256 = vunpack.c.l.b16 %v51
  %v257 = vunpack.c.l.b16 %v52
  %v258 = vunpack.c.l.b16 %v53
  %v259 = vunpack.c.l.b16 %v54
  %v260 = vunpack.c.l.b16 %v55
  %v261 = vunpack.c.l.b16 %v56
  %v262 = vunpack.c.l.b16 %v57
  %v263 = vunpack.c.l.b16 %v58
  %v264 = vunpack.c.l.b16 %v59
  %v265 = vunpack.c.l.b16 %v60
  %v266 = vunpack.c.l.b16 %v61
  %v267 = vunpack.c.l.b16 %v62
  %v268 = vunpack.c.l.b16 %v63
  %v269 = vunpack.c.l.b16 %v64
  %v270 = vunpack.c.l.b16 %v65
  %v271 = vunpack.c.l.b16 %v66
  %v272 = vunpack.c.l.b16 %v67
  %v273 = vunpack.c.l.b16 %v68
  %v274 = vunpack.c.l.b16 %v69
  %v275 = vunpack.c.l.b16 %v70
  %v276 = vunpack.c.l.b16 %v71
  %v277 = vunpack.c.l.b16 %v72
  %v278 = vunpack.c.l.b16 %v73
  %v279 = vunpack.c.l.b16 %v74
  %v280 = vunpack.c.l.b16 %v75
  %v281 = vunpack.c.l.b16 %v76
  %v282 = vunpack.c.l.b16 %v77
  %v283 = vunpack.c.l.b16 %v78
  %v284 = vunpack.c.l.b16 %v79
  %v285 = vunpack.c.l.b16 %v80
  %v286 = vunpack.c.l.b16 %v81
  %v287 = vunpack.c.l.b16 %v82
  %v288 = vunpack.c.l.b16 %v83
  %v289 = vunpack.c.l.b16 %v84
  %v290 = vunpack.c.l.b16 %v85
  %v291 = vunpack.c.l.b16 %v86
  %v292 = vunpack.c.l.b16 %v87
  %v293 = vunpack.c.l.b16 %v88
  %v294 = vunpack.c.l.b16 %v89
  %v295 = vunpack.c.l.b16 %v90
  %v296 = vunpack.c.l.b16 %v91
  %v297 = vunpack.c.l.b16 %v92
  %v298 = vunpack.c.l.b16 %v93
  %v299 = vunpack.c.l.b16 %v94
  %v300 = vunpack.c.l.b16 %v95
  %v301 = vunpack.c.l.b16 %v96
  %v302 = vunpack.c.l.b16 %v97
  %v303 = vunpack.c.l.b16 %v98
  %v304 = vunpack.c.l.b16 %v99
  %v305 = vunpack.c.l.b16 %v100
  %v306 = vunpack.c.l.b16 %v101
  %v307 = vunpack.c.l.b16 %v102
  %v308 = vunpack.c.l.b16 %v103
  %v309 = vunpack.c.l.b16 %v104
  %v310 = vunpack.c.l.b16 %v105
  %v311 = vunpack.c.l.b16 %v106
  %v312 = vunpack.c.l.b16 %v107
  %v313 = vunpack.c.l.b16 %v108
  %v314 = vunpack.c.l.b16 %v109
  %v315 = vunpack.c.l.b16 %v110
  %v316 = vunpack.c.l.b16 %v111
  %v317 = vunpack.c.l.b16 %v112
  %v318 = vunpack.c.l.b16 %v113
  %v319 = vpack.c.b16 %v224, %v223
  %v320 = vpack.c.b16 %v226, %v225
  %v321 = vpack.c.b16 %v228, %v227
  %v322 = vpack.c.b16 %v230, %v229
  %v323 = vpack.c.b16 %v232, %v231
  %v324 = vpack.c.b16 %v234, %v233
  %v325 = vpack.c.b16 %v236, %v235
  %v326 = vpack.c.b16 %v238, %v237
  %v327 = vpack.c.b16 %v240, %v239
  %v328 = vpack.c.b16 %v242, %v241
  %v329 = vpack.c.b16 %v244, %v243
  %v330 = vpack.c.b16 %v246, %v245
  %v331 = vpack.c.b16 %v248, %v247
  %v332 = vpack.c.b16 %v250, %v249
  %v333 = vpack.c.b16 %v252, %v251
  %v334 = vpack.c.b16 %v254, %v253
  %v335 = vpack.c.b16 %v256, %v255
  %v336 = vpack.c.b16 %v258, %v257
  %v337 = vpack.c.b16 %v260, %v259
  %v338 = vpack.c.b16 %v262, %v261
  %v339 = vpack.c.b16 %v264, %v263
  %v340 = vpack.c.b16 %v266, %v265
  %v341 = vpack.c.b16 %v268, %v267
  %v342 = vpack.c.b16 %v270, %v269
  %v343 = vpack.c.b16 %v272, %v271
  %v344 = vpack.c.b16 %v274, %v273
  %v345 = vpack.c.b16 %v276, %v275
  %v346 = vpack.c.b16 %v278, %v277
  %v347 = vpack.c.b16 %v280, %v279
  %v348 = vpack.c.b16 %v282, %v281
  %v349 = vpack.c.b16 %v284, %v283
  %v350 = vpack.c.b16 %v286, %v285
  %v351 = vpack.c.b16 %v288, %v287
  %v352 = vpack.c.b16 %v290, %v289
  %v353 = vpack.c.b16 %v292, %v291
  %v354 = vpack.c.b16 %v294, %v293
  %v355 = vpack.c.b16 %v296, %v295
  %v356 = vpack.c.b16 %v298, %v297
  %v357 = vpack.c.b16 %v300, %v299
  %v358 = vpack.c.b16 %v302, %v301
  %v359 = vpack.c.b16 %v304, %v303
  %v360 = vpack.c.b16 %v306, %v305
  %v361 = vpack.c.b16 %v308, %v307
  %v362 = vpack.c.b16 %v310, %v309
  %v363 = vpack.c.b16 %v312, %v311
  %v364 = vpack.c.b16 %v314, %v313
  %v365 = vpack.c.b16 %v316, %v315
  %v366 = vpack.c.b16 %v318, %v317
  %v380 = vunpack.c.l.b16 %v114
  %v381 = vunpack.c.l.b16 %v115
  %v382 = vunpack.c.l.b16 %v116
  %v383 = vunpack.c.l.b16 %v117
  %v384 = vunpack.c.l.b16 %v118
  %v385 = vunpack.c.l.b16 %v119
  %v386 = vunpack.c.l.b16 %v120
  %v387 = vunpack.c.l.b16 %v121
  %v388 = vunpack.c.l.b16 %v122
  %v389 = vunpack.c.l.b16 %v123
  %v390 = vunpack.c.l.b16 %v124
  %v391 = vunpack.c.l.b16 %v125
  %v392 = vunpack.c.l.b16 %v126
  %v393 = vpack.c.b16 %v381, %v380
  %v394 = vpack.c.b16 %v383, %v382
  %v395 = vpack.c.b16 %v385, %v384
  %v396 = vpack.c.b16 %v387, %v386
  %v397 = vpack.c.b16 %v389, %v388
  %v398 = vpack.c.b16 %v391, %v390
  %v399 = vpack.c.b16 %v392, %v392
  %vm406 = vcmask 793600
  %v408 = vsel %vm406, %v319, 0
  %v411 = vsel %vm406, %v320, 0
  %v414 = vsel %vm406, %v321, 0
  %v417 = vsel %vm406, %v322, 0
  %v420 = vsel %vm406, %v323, 0
  %v423 = vsel %vm406, %v324, 0
  %v426 = vsel %vm406, %v325, 0
  %v429 = vsel %vm406, %v326, 0
  %v432 = vsel %vm406, %v327, 0
  %v435 = vsel %vm406, %v328, 0
  %v438 = vsel %vm406, %v329, 0
  %v441 = vsel %vm406, %v330, 0
  %v444 = vsel %vm406, %v331, 0
  %v447 = vsel %vm406, %v332, 0
  %v450 = vsel %vm406, %v333, 0
  %v453 = vsel %vm406, %v334, 0
  %v456 = vsel %vm406, %v335, 0
  %v459 = vsel %vm406, %v336, 0
  %v462 = vsel %vm406, %v337, 0
  %v465 = vsel %vm406, %v338, 0
  %v468 = vsel %vm406, %v339, 0
  %v471 = vsel %vm406, %v340, 0
  %v474 = vsel %vm406, %v341, 0
  %v477 = vsel %vm406, %v342, 0
  %v480 = vsel %vm406, %v343, 0
  %v483 = vsel %vm406, %v344, 0
  %v486 = vsel %vm406, %v345, 0
  %v489 = vsel %vm406, %v346, 0
  %v492 = vsel %vm406, %v347, 0
  %v495 = vsel %vm406, %v348, 0
  %v498 = vsel %vm406, %v349, 0
  %v501 = vsel %vm406, %v350, 0
  %v504 = vsel %vm406, %v351, 0
  %v507 = vsel %vm406, %v352, 0
  %v510 = vsel %vm406, %v353, 0
  %v513 = vsel %vm406, %v354, 0
  %v516 = vsel %vm406, %v355, 0
  %v519 = vsel %vm406, %v356, 0
  %v522 = vsel %vm406, %v357, 0
  %v525 = vsel %vm406, %v358, 0
  %v528 = vsel %vm406, %v359, 0
  %v531 = vsel %vm406, %v360, 0
  %v534 = vsel %vm406, %v361, 0
  %v537 = vsel %vm406, %v362, 0
  %v540 = vsel %vm406, %v363, 0
  %v543 = vsel %vm406, %v364, 0
  %v546 = vsel %vm406, %v365, 0
  %v549 = vsel %vm406, %v366, 0
  %vm551 = vcmask 1040384
  %v552 = vsel 0, 4294967295, 65535
  %v553 = vsel %vm551, %v552, 0
  %v555 = vand.u32 %v399, %v553
  %557 = vmatprep.subr.bf16.mxu0 0
  %558 = vmatpush1.bf16.msra.mxu0 %v393
  %559 = vmatprep.subr.bf16.mxu0 0
  %560 = vmatpush1.bf16.msra.mxu0 %v394
  %561 = vmatprep.subr.bf16.mxu0 0
  %562 = vmatpush1.bf16.msra.mxu0 %v395
  %563 = vmatprep.subr.bf16.mxu0 0
  %564 = vmatpush1.bf16.msra.mxu0 %v396
  %565 = vmatprep.subr.bf16.mxu0 0
  %566 = vmatpush1.bf16.msra.mxu0 %v397
  %567 = vmatprep.subr.bf16.mxu0 0
  %568 = vmatpush1.bf16.msra.mxu0 %v398
  %569 = vmatprep.subr.bf16.mxu0 0
  %570 = vmatpush1.bf16.msra.mxu0 %v555
  %571 = vmatprep.subr.bf16.mxu0 0
  %572 = vmatpush1.bf16.msra.mxu0 0
  %573 = vmatprep.subr.bf16.mxu0 0
  %574 = vmatpush1.bf16.msra.mxu0 0
  %575 = vmatprep.subr.bf16.mxu0 0
  %576 = vmatpush1.bf16.msra.mxu0 0
  %577 = vmatprep.subr.bf16.mxu0 0
  %578 = vmatpush1.bf16.msra.mxu0 0
  %579 = vmatprep.subr.bf16.mxu0 0
  %580 = vmatpush1.bf16.msra.mxu0 0
  %581 = vmatprep.subr.bf16.mxu0 0
  %582 = vmatpush1.bf16.msra.mxu0 0
  %583 = vmatprep.subr.bf16.mxu0 0
  %584 = vmatpush1.bf16.msra.mxu0 0
  %585 = vmatprep.subr.bf16.mxu0 0
  %586 = vmatpush1.bf16.msra.mxu0 0
  %587 = vmatprep.subr.bf16.mxu0 0
  %588 = vmatpush1.bf16.msra.mxu0 0
  %589 = vmatprep.mubr.bf16.mxu0 0
  %590 = vmatmul.mubr.bf16.gmra.mrb[0].mxu0 %v408
  %v591 = vpop.f32.mrb[0].mxu0
  %v592 = vadd.f32 0.0, %v591
  %v593 = vpop.f32.mrb[0].mxu0
  %v594 = vpop.f32.mrb[0].mxu0
  %v595 = vadd.f32 0.0, %v594
  %v596 = vpop.f32.mrb[0].mxu0
  %597 = vmatprep.mubr.bf16.mxu0 0
  %598 = vmatmul.mubr.bf16.gmra.mrb[0].mxu0 %v411
  %v599 = vpop.f32.mrb[0].mxu0
  %v600 = vadd.f32 0.0, %v599
  %v601 = vpop.f32.mrb[0].mxu0
  %v602 = vpop.f32.mrb[0].mxu0
  %v603 = vadd.f32 0.0, %v602
  %v604 = vpop.f32.mrb[0].mxu0
  %605 = vmatprep.mubr.bf16.mxu0 0
  %606 = vmatmul.mubr.bf16.gmra.mrb[0].mxu0 %v414
  %v607 = vpop.f32.mrb[0].mxu0
  %v608 = vadd.f32 0.0, %v607
  %v609 = vpop.f32.mrb[0].mxu0
  %v610 = vpop.f32.mrb[0].mxu0
  %v611 = vadd.f32 0.0, %v610
  %v612 = vpop.f32.mrb[0].mxu0
  %613 = vmatprep.mubr.bf16.mxu0 0
  %614 = vmatmul.mubr.bf16.gmra.mrb[0].mxu0 %v417
  %v615 = vpop.f32.mrb[0].mxu0
  %v616 = vadd.f32 0.0, %v615
  %v617 = vpop.f32.mrb[0].mxu0
  %v618 = vpop.f32.mrb[0].mxu0
  %v619 = vadd.f32 0.0, %v618
  %v620 = vpop.f32.mrb[0].mxu0
  %621 = vmatprep.mubr.bf16.mxu0 0
  %622 = vmatmul.mubr.bf16.gmra.mrb[0].mxu0 %v420
  %v623 = vpop.f32.mrb[0].mxu0
  %v624 = vadd.f32 0.0, %v623
  %v625 = vpop.f32.mrb[0].mxu0
  %v626 = vpop.f32.mrb[0].mxu0
  %v627 = vadd.f32 0.0, %v626
  %v628 = vpop.f32.mrb[0].mxu0
  %629 = vmatprep.mubr.bf16.mxu0 0
  %630 = vmatmul.mubr.bf16.gmra.mrb[0].mxu0 %v423
  %v631 = vpop.f32.mrb[0].mxu0
  %v632 = vadd.f32 0.0, %v631
  %v633 = vpop.f32.mrb[0].mxu0
  %v634 = vpop.f32.mrb[0].mxu0
  %v635 = vadd.f32 0.0, %v634
  %v636 = vpop.f32.mrb[0].mxu0
  %637 = vmatprep.mubr.bf16.mxu0 0
  %638 = vmatmul.mubr.bf16.gmra.mrb[0].mxu0 %v426
  %v639 = vpop.f32.mrb[0].mxu0
  %v640 = vadd.f32 0.0, %v639
  %v641 = vpop.f32.mrb[0].mxu0
  %v642 = vpop.f32.mrb[0].mxu0
  %v643 = vadd.f32 0.0, %v642
  %v644 = vpop.f32.mrb[0].mxu0
  %645 = vmatprep.mubr.bf16.mxu0 0
  %646 = vmatmul.mubr.bf16.gmra.mrb[0].mxu0 %v429
  %v647 = vpop.f32.mrb[0].mxu0
  %v648 = vadd.f32 0.0, %v647
  %v649 = vpop.f32.mrb[0].mxu0
  %v650 = vpop.f32.mrb[0].mxu0
  %v651 = vadd.f32 0.0, %v650
  %v652 = vpop.f32.mrb[0].mxu0
  %653 = vmatprep.mubr.bf16.mxu0 0
  %654 = vmatmul.mubr.bf16.gmra.mrb[0].mxu0 %v432
  %v655 = vpop.f32.mrb[0].mxu0
  %v656 = vadd.f32 0.0, %v655
  %v657 = vpop.f32.mrb[0].mxu0
  %v658 = vpop.f32.mrb[0].mxu0
  %v659 = vadd.f32 0.0, %v658
  %v660 = vpop.f32.mrb[0].mxu0
  %661 = vmatprep.mubr.bf16.mxu0 0
  %662 = vmatmul.mubr.bf16.gmra.mrb[0].mxu0 %v435
  %v663 = vpop.f32.mrb[0].mxu0
  %v664 = vadd.f32 0.0, %v663
  %v665 = vpop.f32.mrb[0].mxu0
  %v666 = vpop.f32.mrb[0].mxu0
  %v667 = vadd.f32 0.0, %v666
  %v668 = vpop.f32.mrb[0].mxu0
  %669 = vmatprep.mubr.bf16.mxu0 0
  %670 = vmatmul.mubr.bf16.gmra.mrb[0].mxu0 %v438
  %v671 = vpop.f32.mrb[0].mxu0
  %v672 = vadd.f32 0.0, %v671
  %v673 = vpop.f32.mrb[0].mxu0
  %v674 = vpop.f32.mrb[0].mxu0
  %v675 = vadd.f32 0.0, %v674
  %v676 = vpop.f32.mrb[0].mxu0
  %677 = vmatprep.mubr.bf16.mxu0 0
  %678 = vmatmul.mubr.bf16.gmra.mrb[0].mxu0 %v441
  %v679 = vpop.f32.mrb[0].mxu0
  %v680 = vadd.f32 0.0, %v679
  %v681 = vpop.f32.mrb[0].mxu0
  %v682 = vpop.f32.mrb[0].mxu0
  %v683 = vadd.f32 0.0, %v682
  %v684 = vpop.f32.mrb[0].mxu0
  %685 = vmatprep.mubr.bf16.mxu0 0
  %686 = vmatmul.mubr.bf16.gmra.mrb[0].mxu0 %v444
  %v687 = vpop.f32.mrb[0].mxu0
  %v688 = vadd.f32 0.0, %v687
  %v689 = vpop.f32.mrb[0].mxu0
  %v690 = vpop.f32.mrb[0].mxu0
  %v691 = vadd.f32 0.0, %v690
  %v692 = vpop.f32.mrb[0].mxu0
  %693 = vmatprep.mubr.bf16.mxu0 0
  %694 = vmatmul.mubr.bf16.gmra.mrb[0].mxu0 %v447
  %v695 = vpop.f32.mrb[0].mxu0
  %v696 = vadd.f32 0.0, %v695
  %v697 = vpop.f32.mrb[0].mxu0
  %v698 = vpop.f32.mrb[0].mxu0
  %v699 = vadd.f32 0.0, %v698
  %v700 = vpop.f32.mrb[0].mxu0
  %701 = vmatprep.mubr.bf16.mxu0 0
  %702 = vmatmul.mubr.bf16.gmra.mrb[0].mxu0 %v450
  %v703 = vpop.f32.mrb[0].mxu0
  %v704 = vadd.f32 0.0, %v703
  %v705 = vpop.f32.mrb[0].mxu0
  %v706 = vpop.f32.mrb[0].mxu0
  %v707 = vadd.f32 0.0, %v706
  %v708 = vpop.f32.mrb[0].mxu0
  %709 = vmatprep.mubr.bf16.mxu0 0
  %710 = vmatmul.mubr.bf16.gmra.mrb[0].mxu0 %v453
  %v711 = vpop.f32.mrb[0].mxu0
  %v712 = vadd.f32 0.0, %v711
  %v713 = vpop.f32.mrb[0].mxu0
  %v714 = vpop.f32.mrb[0].mxu0
  %v715 = vadd.f32 0.0, %v714
  %v716 = vpop.f32.mrb[0].mxu0
  %717 = vmatprep.mubr.bf16.mxu0 0
  %718 = vmatmul.mubr.bf16.gmra.mrb[0].mxu0 %v456
  %v719 = vpop.f32.mrb[0].mxu0
  %v720 = vadd.f32 0.0, %v719
  %v721 = vpop.f32.mrb[0].mxu0
  %v722 = vpop.f32.mrb[0].mxu0
  %v723 = vadd.f32 0.0, %v722
  %v724 = vpop.f32.mrb[0].mxu0
  %725 = vmatprep.mubr.bf16.mxu0 0
  %726 = vmatmul.mubr.bf16.gmra.mrb[0].mxu0 %v459
  %v727 = vpop.f32.mrb[0].mxu0
  %v728 = vadd.f32 0.0, %v727
  %v729 = vpop.f32.mrb[0].mxu0
  %v730 = vpop.f32.mrb[0].mxu0
  %v731 = vadd.f32 0.0, %v730
  %v732 = vpop.f32.mrb[0].mxu0
  %733 = vmatprep.mubr.bf16.mxu0 0
  %734 = vmatmul.mubr.bf16.gmra.mrb[0].mxu0 %v462
  %v735 = vpop.f32.mrb[0].mxu0
  %v736 = vadd.f32 0.0, %v735
  %v737 = vpop.f32.mrb[0].mxu0
  %v738 = vpop.f32.mrb[0].mxu0
  %v739 = vadd.f32 0.0, %v738
  %v740 = vpop.f32.mrb[0].mxu0
  %741 = vmatprep.mubr.bf16.mxu0 0
  %742 = vmatmul.mubr.bf16.gmra.mrb[0].mxu0 %v465
  %v743 = vpop.f32.mrb[0].mxu0
  %v744 = vadd.f32 0.0, %v743
  %v745 = vpop.f32.mrb[0].mxu0
  %v746 = vpop.f32.mrb[0].mxu0
  %v747 = vadd.f32 0.0, %v746
  %v748 = vpop.f32.mrb[0].mxu0
  %749 = vmatprep.mubr.bf16.mxu0 0
  %750 = vmatmul.mubr.bf16.gmra.mrb[0].mxu0 %v468
  %v751 = vpop.f32.mrb[0].mxu0
  %v752 = vadd.f32 0.0, %v751
  %v753 = vpop.f32.mrb[0].mxu0
  %v754 = vpop.f32.mrb[0].mxu0
  %v755 = vadd.f32 0.0, %v754
  %v756 = vpop.f32.mrb[0].mxu0
  %757 = vmatprep.mubr.bf16.mxu0 0
  %758 = vmatmul.mubr.bf16.gmra.mrb[0].mxu0 %v471
  %v759 = vpop.f32.mrb[0].mxu0
  %v760 = vadd.f32 0.0, %v759
  %v761 = vpop.f32.mrb[0].mxu0
  %v762 = vpop.f32.mrb[0].mxu0
  %v763 = vadd.f32 0.0, %v762
  %v764 = vpop.f32.mrb[0].mxu0
  %765 = vmatprep.mubr.bf16.mxu0 0
  %766 = vmatmul.mubr.bf16.gmra.mrb[0].mxu0 %v474
  %v767 = vpop.f32.mrb[0].mxu0
  %v768 = vadd.f32 0.0, %v767
  %v769 = vpop.f32.mrb[0].mxu0
  %v770 = vpop.f32.mrb[0].mxu0
  %v771 = vadd.f32 0.0, %v770
  %v772 = vpop.f32.mrb[0].mxu0
  %773 = vmatprep.mubr.bf16.mxu0 0
  %774 = vmatmul.mubr.bf16.gmra.mrb[0].mxu0 %v477
  %v775 = vpop.f32.mrb[0].mxu0
  %v776 = vadd.f32 0.0, %v775
  %v777 = vpop.f32.mrb[0].mxu0
  %v778 = vpop.f32.mrb[0].mxu0
  %v779 = vadd.f32 0.0, %v778
  %v780 = vpop.f32.mrb[0].mxu0
  %781 = vmatprep.mubr.bf16.mxu0 0
  %782 = vmatmul.mubr.bf16.gmra.mrb[0].mxu0 %v480
  %v783 = vpop.f32.mrb[0].mxu0
  %v784 = vadd.f32 0.0, %v783
  %v785 = vpop.f32.mrb[0].mxu0
  %v786 = vpop.f32.mrb[0].mxu0
  %v787 = vadd.f32 0.0, %v786
  %v788 = vpop.f32.mrb[0].mxu0
  %789 = vmatprep.mubr.bf16.mxu0 0
  %790 = vmatmul.mubr.bf16.gmra.mrb[0].mxu0 %v483
  %v791 = vpop.f32.mrb[0].mxu0
  %v792 = vadd.f32 0.0, %v791
  %v793 = vpop.f32.mrb[0].mxu0
  %v794 = vpop.f32.mrb[0].mxu0
  %v795 = vadd.f32 0.0, %v794
  %v796 = vpop.f32.mrb[0].mxu0
  %797 = vmatprep.mubr.bf16.mxu0 0
  %798 = vmatmul.mubr.bf16.gmra.mrb[0].mxu0 %v486
  %v799 = vpop.f32.mrb[0].mxu0
  %v800 = vadd.f32 0.0, %v799
  %v801 = vpop.f32.mrb[0].mxu0
  %v802 = vpop.f32.mrb[0].mxu0
  %v803 = vadd.f32 0.0, %v802
  %v804 = vpop.f32.mrb[0].mxu0
  %805 = vmatprep.mubr.bf16.mxu0 0
  %806 = vmatmul.mubr.bf16.gmra.mrb[0].mxu0 %v489
  %v807 = vpop.f32.mrb[0].mxu0
  %v808 = vadd.f32 0.0, %v807
  %v809 = vpop.f32.mrb[0].mxu0
  %v810 = vpop.f32.mrb[0].mxu0
  %v811 = vadd.f32 0.0, %v810
  %v812 = vpop.f32.mrb[0].mxu0
  %813 = vmatprep.mubr.bf16.mxu0 0
  %814 = vmatmul.mubr.bf16.gmra.mrb[0].mxu0 %v492
  %v815 = vpop.f32.mrb[0].mxu0
  %v816 = vadd.f32 0.0, %v815
  %v817 = vpop.f32.mrb[0].mxu0
  %v818 = vpop.f32.mrb[0].mxu0
  %v819 = vadd.f32 0.0, %v818
  %v820 = vpop.f32.mrb[0].mxu0
  %821 = vmatprep.mubr.bf16.mxu0 0
  %822 = vmatmul.mubr.bf16.gmra.mrb[0].mxu0 %v495
  %v823 = vpop.f32.mrb[0].mxu0
  %v824 = vadd.f32 0.0, %v823
  %v825 = vpop.f32.mrb[0].mxu0
  %v826 = vpop.f32.mrb[0].mxu0
  %v827 = vadd.f32 0.0, %v826
  %v828 = vpop.f32.mrb[0].mxu0
  %829 = vmatprep.mubr.bf16.mxu0 0
  %830 = vmatmul.mubr.bf16.gmra.mrb[0].mxu0 %v498
  %v831 = vpop.f32.mrb[0].mxu0
  %v832 = vadd.f32 0.0, %v831
  %v833 = vpop.f32.mrb[0].mxu0
  %v834 = vpop.f32.mrb[0].mxu0
  %v835 = vadd.f32 0.0, %v834
  %v836 = vpop.f32.mrb[0].mxu0
  %837 = vmatprep.mubr.bf16.mxu0 0
  %838 = vmatmul.mubr.bf16.gmra.mrb[0].mxu0 %v501
  %v839 = vpop.f32.mrb[0].mxu0
  %v840 = vadd.f32 0.0, %v839
  %v841 = vpop.f32.mrb[0].mxu0
  %v842 = vpop.f32.mrb[0].mxu0
  %v843 = vadd.f32 0.0, %v842
  %v844 = vpop.f32.mrb[0].mxu0
  %845 = vmatprep.mubr.bf16.mxu0 0
  %846 = vmatmul.mubr.bf16.gmra.mrb[0].mxu0 %v504
  %v847 = vpop.f32.mrb[0].mxu0
  %v848 = vadd.f32 0.0, %v847
  %v849 = vpop.f32.mrb[0].mxu0
  %v850 = vpop.f32.mrb[0].mxu0
  %v851 = vadd.f32 0.0, %v850
  %v852 = vpop.f32.mrb[0].mxu0
  %853 = vmatprep.mubr.bf16.mxu0 0
  %854 = vmatmul.mubr.bf16.gmra.mrb[0].mxu0 %v507
  %v855 = vpop.f32.mrb[0].mxu0
  %v856 = vadd.f32 0.0, %v855
  %v857 = vpop.f32.mrb[0].mxu0
  %v858 = vpop.f32.mrb[0].mxu0
  %v859 = vadd.f32 0.0, %v858
  %v860 = vpop.f32.mrb[0].mxu0
  %861 = vmatprep.mubr.bf16.mxu0 0
  %862 = vmatmul.mubr.bf16.gmra.mrb[0].mxu0 %v510
  %v863 = vpop.f32.mrb[0].mxu0
  %v864 = vadd.f32 0.0, %v863
  %v865 = vpop.f32.mrb[0].mxu0
  %v866 = vpop.f32.mrb[0].mxu0
  %v867 = vadd.f32 0.0, %v866
  %v868 = vpop.f32.mrb[0].mxu0
  %869 = vmatprep.mubr.bf16.mxu0 0
  %870 = vmatmul.mubr.bf16.gmra.mrb[0].mxu0 %v513
  %v871 = vpop.f32.mrb[0].mxu0
  %v872 = vadd.f32 0.0, %v871
  %v873 = vpop.f32.mrb[0].mxu0
  %v874 = vpop.f32.mrb[0].mxu0
  %v875 = vadd.f32 0.0, %v874
  %v876 = vpop.f32.mrb[0].mxu0
  %877 = vmatprep.mubr.bf16.mxu0 0
  %878 = vmatmul.mubr.bf16.gmra.mrb[0].mxu0 %v516
  %v879 = vpop.f32.mrb[0].mxu0
  %v880 = vadd.f32 0.0, %v879
  %v881 = vpop.f32.mrb[0].mxu0
  %v882 = vpop.f32.mrb[0].mxu0
  %v883 = vadd.f32 0.0, %v882
  %v884 = vpop.f32.mrb[0].mxu0
  %885 = vmatprep.mubr.bf16.mxu0 0
  %886 = vmatmul.mubr.bf16.gmra.mrb[0].mxu0 %v519
  %v887 = vpop.f32.mrb[0].mxu0
  %v888 = vadd.f32 0.0, %v887
  %v889 = vpop.f32.mrb[0].mxu0
  %v890 = vpop.f32.mrb[0].mxu0
  %v891 = vadd.f32 0.0, %v890
  %v892 = vpop.f32.mrb[0].mxu0
  %893 = vmatprep.mubr.bf16.mxu0 0
  %894 = vmatmul.mubr.bf16.gmra.mrb[0].mxu0 %v522
  %v895 = vpop.f32.mrb[0].mxu0
  %v896 = vadd.f32 0.0, %v895
  %v897 = vpop.f32.mrb[0].mxu0
  %v898 = vpop.f32.mrb[0].mxu0
  %v899 = vadd.f32 0.0, %v898
  %v900 = vpop.f32.mrb[0].mxu0
  %901 = vmatprep.mubr.bf16.mxu0 0
  %902 = vmatmul.mubr.bf16.gmra.mrb[0].mxu0 %v525
  %v903 = vpop.f32.mrb[0].mxu0
  %v904 = vadd.f32 0.0, %v903
  %v905 = vpop.f32.mrb[0].mxu0
  %v906 = vpop.f32.mrb[0].mxu0
  %v907 = vadd.f32 0.0, %v906
  %v908 = vpop.f32.mrb[0].mxu0
  %909 = vmatprep.mubr.bf16.mxu0 0
  %910 = vmatmul.mubr.bf16.gmra.mrb[0].mxu0 %v528
  %v911 = vpop.f32.mrb[0].mxu0
  %v912 = vadd.f32 0.0, %v911
  %v913 = vpop.f32.mrb[0].mxu0
  %v914 = vpop.f32.mrb[0].mxu0
  %v915 = vadd.f32 0.0, %v914
  %v916 = vpop.f32.mrb[0].mxu0
  %917 = vmatprep.mubr.bf16.mxu0 0
  %918 = vmatmul.mubr.bf16.gmra.mrb[0].mxu0 %v531
  %v919 = vpop.f32.mrb[0].mxu0
  %v920 = vadd.f32 0.0, %v919
  %v921 = vpop.f32.mrb[0].mxu0
  %v922 = vpop.f32.mrb[0].mxu0
  %v923 = vadd.f32 0.0, %v922
  %v924 = vpop.f32.mrb[0].mxu0
  %925 = vmatprep.mubr.bf16.mxu0 0
  %926 = vmatmul.mubr.bf16.gmra.mrb[0].mxu0 %v534
  %v927 = vpop.f32.mrb[0].mxu0
  %v928 = vadd.f32 0.0, %v927
  %v929 = vpop.f32.mrb[0].mxu0
  %v930 = vpop.f32.mrb[0].mxu0
  %v931 = vadd.f32 0.0, %v930
  %v932 = vpop.f32.mrb[0].mxu0
  %933 = vmatprep.mubr.bf16.mxu0 0
  %934 = vmatmul.mubr.bf16.gmra.mrb[0].mxu0 %v537
  %v935 = vpop.f32.mrb[0].mxu0
  %v936 = vadd.f32 0.0, %v935
  %v937 = vpop.f32.mrb[0].mxu0
  %v938 = vpop.f32.mrb[0].mxu0
  %v939 = vadd.f32 0.0, %v938
  %v940 = vpop.f32.mrb[0].mxu0
  %941 = vmatprep.mubr.bf16.mxu0 0
  %942 = vmatmul.mubr.bf16.gmra.mrb[0].mxu0 %v540
  %v943 = vpop.f32.mrb[0].mxu0
  %v944 = vadd.f32 0.0, %v943
  %v945 = vpop.f32.mrb[0].mxu0
  %v946 = vpop.f32.mrb[0].mxu0
  %v947 = vadd.f32 0.0, %v946
  %v948 = vpop.f32.mrb[0].mxu0
  %949 = vmatprep.mubr.bf16.mxu0 0
  %950 = vmatmul.mubr.bf16.gmra.mrb[0].mxu0 %v543
  %v951 = vpop.f32.mrb[0].mxu0
  %v952 = vadd.f32 0.0, %v951
  %v953 = vpop.f32.mrb[0].mxu0
  %v954 = vpop.f32.mrb[0].mxu0
  %v955 = vadd.f32 0.0, %v954
  %v956 = vpop.f32.mrb[0].mxu0
  %957 = vmatprep.mubr.bf16.mxu0 0
  %958 = vmatmul.mubr.bf16.gmra.mrb[0].mxu0 %v546
  %v959 = vpop.f32.mrb[0].mxu0
  %v960 = vadd.f32 0.0, %v959
  %v961 = vpop.f32.mrb[0].mxu0
  %v962 = vpop.f32.mrb[0].mxu0
  %v963 = vadd.f32 0.0, %v962
  %v964 = vpop.f32.mrb[0].mxu0
  %965 = vmatprep.mubr.bf16.mxu0 0
  %966 = vmatmul.mubr.bf16.gmra.mrb[0].mxu0 %v549
  %v967 = vpop.f32.mrb[0].mxu0
  %v968 = vadd.f32 0.0, %v967
  %v969 = vpop.f32.mrb[0].mxu0
  %v970 = vpop.f32.mrb[0].mxu0
  %v971 = vadd.f32 0.0, %v970
  %v972 = vpop.f32.mrb[0].mxu0
  %973 = vdwg.mxu0
  %v974 = vmax.f32 %v592, %v688
  %v975 = vmax.f32 %v595, %v691
  %v976 = vmax.f32 %v600, %v696
  %v977 = vmax.f32 %v603, %v699
  %v978 = vmax.f32 %v608, %v704
  %v979 = vmax.f32 %v611, %v707
  %v980 = vmax.f32 %v616, %v712
  %v981 = vmax.f32 %v619, %v715
  %v982 = vmax.f32 %v624, %v720
  %v983 = vmax.f32 %v627, %v723
  %v984 = vmax.f32 %v632, %v728
  %v985 = vmax.f32 %v635, %v731
  %v986 = vmax.f32 %v640, %v736
  %v987 = vmax.f32 %v643, %v739
  %v988 = vmax.f32 %v648, %v744
  %v989 = vmax.f32 %v651, %v747
  %v990 = vmax.f32 %v656, %v752
  %v991 = vmax.f32 %v659, %v755
  %v992 = vmax.f32 %v664, %v760
  %v993 = vmax.f32 %v667, %v763
  %v994 = vmax.f32 %v672, %v768
  %v995 = vmax.f32 %v675, %v771
  %v996 = vmax.f32 %v680, %v776
  %v997 = vmax.f32 %v683, %v779
  %v998 = vmax.f32 %v784, %v880
  %v999 = vmax.f32 %v787, %v883
  %v1000 = vmax.f32 %v792, %v888
  %v1001 = vmax.f32 %v795, %v891
  %v1002 = vmax.f32 %v800, %v896
  %v1003 = vmax.f32 %v803, %v899
  %v1004 = vmax.f32 %v808, %v904
  %v1005 = vmax.f32 %v811, %v907
  %v1006 = vmax.f32 %v816, %v912
  %v1007 = vmax.f32 %v819, %v915
  %v1008 = vmax.f32 %v824, %v920
  %v1009 = vmax.f32 %v827, %v923
  %v1010 = vmax.f32 %v832, %v928
  %v1011 = vmax.f32 %v835, %v931
  %v1012 = vmax.f32 %v840, %v936
  %v1013 = vmax.f32 %v843, %v939
  %v1014 = vmax.f32 %v848, %v944
  %v1015 = vmax.f32 %v851, %v947
  %v1016 = vmax.f32 %v856, %v952
  %v1017 = vmax.f32 %v859, %v955
  %v1018 = vmax.f32 %v864, %v960
  %v1019 = vmax.f32 %v867, %v963
  %v1020 = vmax.f32 %v872, %v968
  %v1021 = vmax.f32 %v875, %v971
  %v1022 = vmax.f32 %v974, %v998
  %v1023 = vmax.f32 %v975, %v999
  %v1024 = vmax.f32 %v976, %v1000
  %v1025 = vmax.f32 %v977, %v1001
  %v1026 = vmax.f32 %v978, %v1002
  %v1027 = vmax.f32 %v979, %v1003
  %v1028 = vmax.f32 %v980, %v1004
  %v1029 = vmax.f32 %v981, %v1005
  %v1030 = vmax.f32 %v982, %v1006
  %v1031 = vmax.f32 %v983, %v1007
  %v1032 = vmax.f32 %v984, %v1008
  %v1033 = vmax.f32 %v985, %v1009
  %v1034 = vmax.f32 %v986, %v1010
  %v1035 = vmax.f32 %v987, %v1011
  %v1036 = vmax.f32 %v988, %v1012
  %v1037 = vmax.f32 %v989, %v1013
  %v1038 = vmax.f32 %v990, %v1014
  %v1039 = vmax.f32 %v991, %v1015
  %v1040 = vmax.f32 %v992, %v1016
  %v1041 = vmax.f32 %v993, %v1017
  %v1042 = vmax.f32 %v994, %v1018
  %v1043 = vmax.f32 %v995, %v1019
  %v1044 = vmax.f32 %v996, %v1020
  %v1045 = vmax.f32 %v997, %v1021
  %v1046 = vmax.f32 %v1022, 0.0
  %v1047 = vmax.f32 %v1023, 0.0
  %v1048 = vmax.f32 %v1024, 0.0
  %v1049 = vmax.f32 %v1025, 0.0
  %v1050 = vmax.f32 %v1026, 0.0
  %v1051 = vmax.f32 %v1027, 0.0
  %v1052 = vmax.f32 %v1028, 0.0
  %v1053 = vmax.f32 %v1029, 0.0
  %v1054 = vmax.f32 %v1030, 0.0
  %v1055 = vmax.f32 %v1031, 0.0
  %v1056 = vmax.f32 %v1032, 0.0
  %v1057 = vmax.f32 %v1033, 0.0
  %v1058 = vmax.f32 %v1034, 0.0
  %v1059 = vmax.f32 %v1035, 0.0
  %v1060 = vmax.f32 %v1036, 0.0
  %v1061 = vmax.f32 %v1037, 0.0
  %v1062 = vmax.f32 %v1038, 0.0
  %v1063 = vmax.f32 %v1039, 0.0
  %v1064 = vmax.f32 %v1040, 0.0
  %v1065 = vmax.f32 %v1041, 0.0
  %v1066 = vmax.f32 %v1042, 0.0
  %v1067 = vmax.f32 %v1043, 0.0
  %v1068 = vmax.f32 %v1044, 0.0
  %v1069 = vmax.f32 %v1045, 0.0
  %v1070 = vpack.c.bf16 %v1047, %v1046
  %v1071 = vpack.c.bf16 %v1049, %v1048
  %v1072 = vpack.c.bf16 %v1051, %v1050
  %v1073 = vpack.c.bf16 %v1053, %v1052
  %v1074 = vpack.c.bf16 %v1055, %v1054
  %v1075 = vpack.c.bf16 %v1057, %v1056
  %v1076 = vpack.c.bf16 %v1059, %v1058
  %v1077 = vpack.c.bf16 %v1061, %v1060
  %v1078 = vpack.c.bf16 %v1063, %v1062
  %v1079 = vpack.c.bf16 %v1065, %v1064
  %v1080 = vpack.c.bf16 %v1067, %v1066
  %v1081 = vpack.c.bf16 %v1069, %v1068
  %v1082 = vld [vmem:[%s2] sm:$0xf]
  %v1083 = vld [vmem:[%s3] sm:$0x7]
  %1085 = vset.pattern.permute.xlu0 0
  %1086 = vperm.xlu0 %1085, %v1083
  %v1087 = vpop.permute.xlu0 %1086
  %v1091 = vunpack.c.l.s4 1983009808
  %v1092 = vunpack.c.0.s8 %v1091
  %v1093 = vlaneseq
  %v1094 = vshrl.u32 %v1093, 7
  %v1095 = vsub.s32 %v1092, %v1094
  %v1096 = vrot.slane %v1082, %v1095
  %v1097 = vcombine.high %v1096, %v1096
  %vm1099 = vcmask 523264
  %v1101 = vsel %vm1099, %v1097, 0
  %1103 = vmatprep.subr.bf16.mxu0 0
  %1104 = vmatpush1.bf16.msra.mxu0 %v1070
  %1105 = vmatprep.subr.bf16.mxu0 0
  %1106 = vmatpush1.bf16.msra.mxu0 %v1071
  %1107 = vmatprep.subr.bf16.mxu0 0
  %1108 = vmatpush1.bf16.msra.mxu0 %v1072
  %1109 = vmatprep.subr.bf16.mxu0 0
  %1110 = vmatpush1.bf16.msra.mxu0 %v1073
  %1111 = vmatprep.subr.bf16.mxu0 0
  %1112 = vmatpush1.bf16.msra.mxu0 %v1074
  %1113 = vmatprep.subr.bf16.mxu0 0
  %1114 = vmatpush1.bf16.msra.mxu0 %v1075
  %1115 = vmatprep.subr.bf16.mxu0 0
  %1116 = vmatpush1.bf16.msra.mxu0 %v1076
  %1117 = vmatprep.subr.bf16.mxu0 0
  %1118 = vmatpush1.bf16.msra.mxu0 %v1077
  %1119 = vmatprep.subr.bf16.mxu0 0
  %1120 = vmatpush1.bf16.msra.mxu0 %v1078
  %1121 = vmatprep.subr.bf16.mxu0 0
  %1122 = vmatpush1.bf16.msra.mxu0 %v1079
  %1123 = vmatprep.subr.bf16.mxu0 0
  %1124 = vmatpush1.bf16.msra.mxu0 %v1080
  %1125 = vmatprep.subr.bf16.mxu0 0
  %1126 = vmatpush1.bf16.msra.mxu0 %v1081
  %1127 = vmatprep.subr.bf16.mxu0 0
  %1128 = vmatpush1.bf16.msra.mxu0 0
  %1129 = vmatprep.subr.bf16.mxu0 0
  %1130 = vmatpush1.bf16.msra.mxu0 0
  %1131 = vmatprep.subr.bf16.mxu0 0
  %1132 = vmatpush1.bf16.msra.mxu0 0
  %1133 = vmatprep.subr.bf16.mxu0 0
  %1134 = vmatpush1.bf16.msra.mxu0 0
  %1135 = vmatprep.mubr.bf16.mxu0 %v1101
  %1136 = vmatmul.mubr.bf16.gmra.mrb[0].mxu0 %v1096
  %v1137 = vpop.f32.mrb[0].mxu0
  %v1138 = vadd.f32 %v1087, %v1137
  %v1139 = vpop.f32.mrb[0].mxu0
  %v1140 = vpop.f32.mrb[0].mxu0
  %v1141 = vpop.f32.mrb[0].mxu0
  %1142 = vdwg.mxu0
  %1143 = vst [vmem:[%s4] sm:$0x7] %v1138
  // Predicated region
  $region18: #{tpu_custom_call.1} parent=0 // pred_check
    _
  $region19: #{tpu_custom_call.1} parent=0 // pred_check_branch
    %1145 = sbr.rel (0) target = $region21
  $region20: #{tpu_custom_call.1} parent=0 // pred_region
    _
  $region21: #{tpu_custom_call.1} parent=0 // pred_fallthru
    _
  // Predicated region
  $region22: #{tpu_custom_call.1} parent=0 // pred_check
    _
  $region23: #{tpu_custom_call.1} parent=0 // pred_check_branch
    %1147 = sbr.rel (0) target = $region25
  $region24: #{tpu_custom_call.1} parent=0 // pred_region
    _
  $region25: #{tpu_custom_call.1} parent=0 // pred_fallthru
    _

</llo_original>
